<compile_context>
chip_gen: v5e
topology: v5e:2x2
jax: 0.10.0
libtpu: 0.0.40
codegen_flags: <defaults>
</compile_context>

<pallas_src>
import functools

import jax
import jax.numpy as jnp
from jax.experimental import pallas as pl
from jax.experimental.pallas import tpu as pltpu

_LANES = 128
_MAX_TILE_BYTES = 4 * 1024 * 1024      # <= 4 MiB per tile (roofline plateau)
_MULTI_BLOCK_BYTES = 2 * 1024 * 1024   # split grid into >=2 blocks above this
_SMALL_N = 65536                       # below this, skip pallas_call entirely


def _round_up(x: int, m: int) -> int:
    return ((x + m - 1) // m) * m


def _sublane_quantum(dtype) -> int:
    # Sublane packing quantum: 8 rows for 32-bit, 16 for 16-bit, 32 for 8-bit.
    itemsize = jnp.dtype(dtype).itemsize
    return {4: 8, 2: 16, 1: 32}.get(itemsize, 8)


def _calc_z_kernel(sz_ref, z_ref, *, a: float, th: float):
    # Exact clip-then-compare: one VPU mul/add, one clip, one compare, one
    # select/cast per vreg -- far below VALU saturation; HBM is the only
    # binding resource.
    x = sz_ref[...]
    z_tilde = jnp.clip((a * x + 1.0) * 0.5, 0.0, 1.0)
    z_ref[...] = (z_tilde > th).astype(z_ref.dtype)


def calc_z(sz: jax.Array, a: float = 1.0, th: float = 0.5, *,
           out_dtype=None, force_pallas: bool = False) -> jax.Array:
    """Pallas implementation of _CalcZ.forward (elementwise boundary gate).

    `a` and `th` must be static Python scalars (they are baked into the
    kernel, matching the nn.Module constructor arguments).
    """
    a = float(a)
    th = float(th)
    out_dtype = sz.dtype if out_dtype is None else jnp.dtype(out_dtype)
    orig_shape = sz.shape
    n = sz.size

    if n == 0:
        return jnp.zeros(orig_shape, out_dtype)

    # Tiny tensors: the XLA-fused elementwise op is strictly faster than a
    # pallas_call (launch + per-step overhead + slab plumbing).
    if n < _SMALL_N and not force_pallas:
        z_tilde = jnp.clip((a * sz + 1.0) * 0.5, 0.0, 1.0)
        return (z_tilde > th).astype(out_dtype)

    itemsize = jnp.dtype(sz.dtype).itemsize
    sub = max(_sublane_quantum(sz.dtype), _sublane_quantum(out_dtype))

    # ---- lane-dense slab layout (no row padding; free reshape when possible) ----
    pad_tail = 0
    if n % _LANES == 0:
        cols = _LANES
        for c in (1024, 512, 256):
            if n % c == 0:
                cols = c
                break
        rows = n // cols
        slab = sz.reshape(rows, cols)          # contiguous reshape: no copy
    else:
        cols = _LANES
        rows = pl.cdiv(n, cols)
        pad_tail = rows * cols - n             # < 128 elements
        slab = jnp.pad(sz.reshape(-1), (0, pad_tail)).reshape(rows, cols)

    slab_bytes = rows * cols * itemsize

    # ---- block_rows: <= 4 MiB tiles, sublane-aligned, >= 2 blocks for v7x ----
    max_rows_by_vmem = max(sub, (_MAX_TILE_BYTES // (cols * itemsize)) // sub * sub)
    if rows <= sub or slab_bytes <= _MULTI_BLOCK_BYTES:
        # Small slab: single block covering the whole (possibly ragged) row dim.
        block_rows = rows
    else:
        # Ensure at least two grid steps so both v7x TensorCores are busy;
        # Pallas masks the ragged final block, no row padding needed.
        block_rows = min(max_rows_by_vmem, _round_up(pl.cdiv(rows, 2), sub))

    grid = (pl.cdiv(rows, block_rows),)
    spec = pl.BlockSpec((block_rows, cols), lambda i: (i, 0))

    out = pl.pallas_call(
        functools.partial(_calc_z_kernel, a=a, th=th),
        out_shape=jax.ShapeDtypeStruct((rows, cols), out_dtype),
        grid=grid,
        in_specs=[spec],
        out_specs=spec,
        compiler_params=pltpu.CompilerParams(
            dimension_semantics=("parallel",),
            vmem_limit_bytes=32 * 1024 * 1024,
        ),
    )(slab)

    if pad_tail:
        return out.reshape(-1)[:n].reshape(orig_shape)
    return out.reshape(orig_shape)


def _calc_z_ref(sz: jax.Array, a: float = 1.0, th: float = 0.5) -> jax.Array:
    """Pure-JAX reference matching the PyTorch forward."""
    z_tilde = jnp.clip((a * sz + 1.0) * 0.5, 0.0, 1.0)
    return (z_tilde > th).astype(sz.dtype)


if __name__ == "__main__":
    key = jax.random.PRNGKey(0)
    k1, k2, k3 = jax.random.split(key, 3)

    # Primary demo: HM-LSTM boundary pre-activation, (batch, hidden) = (2, 32).
    batch, hidden = 2, 32
    sz = jax.random.normal(k1, (batch, hidden), dtype=jnp.float32) * 2.0

    # Force the Pallas path for the tiny demo input so the kernel runs.
    z = calc_z(sz, a=1.0, th=0.5, force_pallas=True)
    jax.block_until_ready(z)
    assert z.shape == sz.shape and z.dtype == sz.dtype
    assert jnp.array_equal(z, _calc_z_ref(sz, 1.0, 0.5)), "mismatch (small, forced)"

    # Default small-input path (pure JAX fast path).
    z_small = calc_z(sz, a=1.0, th=0.5)
    assert jnp.array_equal(z_small, _calc_z_ref(sz, 1.0, 0.5)), "mismatch (fast path)"

    # Larger input: lane-dense 1024-wide slab, grid > 1 (both v7x TCs), ragged
    # final row block handled by Pallas masking -- no pad, no output trim.
    sz_big = jax.random.normal(k2, (1025, 1024), dtype=jnp.float32)
    z_big = calc_z(sz_big)
    jax.block_until_ready(z_big)
    assert jnp.array_equal(z_big, _calc_z_ref(sz_big)), "mismatch (big, tiled)"

    # Non-128-aligned element count (tail-pad path) with non-default (a, th).
    sz_rag = jax.random.normal(k3, (3, 200), dtype=jnp.float32)
    z_rag = calc_z(sz_rag, a=2.0, th=0.25, force_pallas=True)
    jax.block_until_ready(z_rag)
    assert jnp.array_equal(z_rag, _calc_z_ref(sz_rag, 2.0, 0.25)), "mismatch (ragged)"

    print("KERNEL_OK")
</pallas_src>

<mosaic_0001>
module attributes {stable_mosaic.version = 11 : i64} {
  func.func @_calc_z_kernel(%arg0: i32, %arg1: memref<1x128xf32, #tpu.memory_space<vmem>>, %arg2: memref<1x128xf32, #tpu.memory_space<vmem>>) attributes {dimension_semantics = [#tpu.dimension_semantics<parallel>], iteration_bounds = array<i64: 1>, scalar_prefetch = 0 : i64, scratch_operands = 0 : i64, tpu.core_type = #tpu.core_type<tc>, window_params = [{transform_indices = @transform_0, window_bounds = array<i64: 1, 128>}, {transform_indices = @transform_1, window_bounds = array<i64: 1, 128>}]} {
    %c0 = arith.constant 0 : index
    %c0_0 = arith.constant 0 : index
    %0 = vector.load %arg1[%c0, %c0_0] : memref<1x128xf32, #tpu.memory_space<vmem>>, vector<1x128xf32>
    %cst = arith.constant 1.000000e+00 : f32
    %1 = vector.broadcast %cst : f32 to vector<1x128xf32>
    %2 = arith.mulf %1, %0 : vector<1x128xf32>
    %cst_1 = arith.constant 1.000000e+00 : f32
    %3 = vector.broadcast %cst_1 : f32 to vector<1x128xf32>
    %4 = arith.addf %2, %3 : vector<1x128xf32>
    %cst_2 = arith.constant 5.000000e-01 : f32
    %5 = vector.broadcast %cst_2 : f32 to vector<1x128xf32>
    %6 = arith.mulf %4, %5 : vector<1x128xf32>
    %cst_3 = arith.constant 0.000000e+00 : f32
    %cst_4 = arith.constant 1.000000e+00 : f32
    %7 = vector.broadcast %cst_3 : f32 to vector<1x128xf32>
    %8 = arith.maximumf %7, %6 : vector<1x128xf32>
    %9 = vector.broadcast %cst_4 : f32 to vector<1x128xf32>
    %10 = arith.minimumf %9, %8 : vector<1x128xf32>
    %cst_5 = arith.constant 5.000000e-01 : f32
    %11 = vector.broadcast %cst_5 : f32 to vector<1x128xf32>
    %12 = arith.cmpf ogt, %10, %11 : vector<1x128xf32>
    %13 = arith.extui %12 : vector<1x128xi1> to vector<1x128xi32>
    %14 = arith.sitofp %13 : vector<1x128xi32> to vector<1x128xf32>
    %c0_6 = arith.constant 0 : index
    %c0_7 = arith.constant 0 : index
    %15 = vector.load %arg2[%c0_6, %c0_7] : memref<1x128xf32, #tpu.memory_space<vmem>>, vector<1x128xf32>
    tpu.vector_store %arg2[%c0_6, %c0_7], %14 {strides = array<i32>} : memref<1x128xf32, #tpu.memory_space<vmem>>, vector<1x128xf32>,
    return
  }
  func.func @transform_0(%arg0: i32) -> (i32, i32) {
    %c0_i32 = arith.constant 0 : i32
    %c0_i32_0 = arith.constant 0 : i32
    return %arg0, %c0_i32 : i32, i32
  }
  func.func @transform_1(%arg0: i32) -> (i32, i32) {
    %c0_i32 = arith.constant 0 : i32
    %c0_i32_0 = arith.constant 0 : i32
    return %arg0, %c0_i32 : i32, i32
  }
}

</mosaic_0001>

<llo_original>
// kernel: tpu_custom_call.1
$region0: #{tpu_custom_call.1}
  #allocation0 [shape = 'u32[]', space=smem, size = 0x4, offset = 0x4, fixed_abs, tag = 'smem constant byte address 0x4 - core index']
  #allocation1 [shape = 'u32[72,128]{1,0:T(1,128)}', space=vmem, size = 0x9000, scoped, tag = 'internal scratch']
  %s0 = inlined_call_operand.hbm [shape: f32[1,128], index: 0, kind: input, shape index: {}]
  %s1 = inlined_call_operand.hbm [shape: f32[1,128], index: 1, kind: output, shape index: {}]
  %s2 = sld [smem:[#allocation0]]
  $region18: #{tpu_custom_call.1} parent=0
    _
  %s4 = ssub.s32 1, %s2
  %s5 = scalar_select 0, %s4, %s2
  $region1: #{tpu_custom_call.1} parent=0
    #allocation2 [shape = 'u8[512]{0}', space=vmem, size = 0x400, scoped, tag = 'input window, operand 0, single buffered']
    #allocation3 [shape = 's32[1]{0}', space=sflag, size = 0x4, scoped, tag = 'scoped memory for tpu_custom_call.1']
    #allocation4 [shape = 's32[1]{0}', space=sflag, size = 0x4, scoped, tag = 'scoped memory for tpu_custom_call.1']
    #allocation5 [shape = 'u8[512]{0}', space=vmem, size = 0x400, scoped, tag = 'output window, operand 0, single buffered']
    %6 = vsyncpa [#allocation3], 0
    %7 = vsyncpa [#allocation4], 0
    // Predicated region
    $region2: #{tpu_custom_call.1} parent=1 // pred_check
      _
    $region3: #{tpu_custom_call.1} parent=1 // pred_check_branch
      %9 = sbr.rel (0) target = $region5
    $region4: #{tpu_custom_call.1} parent=1 // pred_region
      %11 = vsyncadd [#allocation3], 0
      %s13 = sshll.u32 %s0, 4
      %s14 = int_to_ptr.hbm [resolvable:$true] %s13
      %s15 = sshll.u32 [#allocation2], 4
      %s16 = int_to_ptr.vmem [resolvable:$true] %s15
      %18 = dma.hbm_to_vmem [thread:$0]  %s14, 16, %s16, [#allocation3]
    $region5: #{tpu_custom_call.1} parent=1 // pred_fallthru
      _
    // Predicated region
    $region6: #{tpu_custom_call.1} parent=1 // pred_check
      _
    $region7: #{tpu_custom_call.1} parent=1 // pred_check_branch
      %20 = sbr.rel (0) target = $region9
    $region8: #{tpu_custom_call.1} parent=1 // pred_region
      %22 = dma.done [#allocation3], 16
    $region9: #{tpu_custom_call.1} parent=1 // pred_fallthru
      _
    %v23 = vld [vmem:[#allocation2] sm:$0x1]
    %v24 = vadd.f32 %v23, 1.0
    %v25 = vmul.f32 %v24, 0.5
    %v26 = vmax.f32 %v25, 0.0
    %v27 = vmin.f32 %v26, 1.0
    %vm28 = vcmp.gt.f32.partialorder %v27, 0.5
    %v29 = vsel %vm28, 1, 0
    %v30 = vcvt.s32.f32 %v29
    %31 = vst [vmem:[#allocation5] sm:$0x1] %v30
    // Predicated region
    $region10: #{tpu_custom_call.1} parent=1 // pred_check
      _
    $region11: #{tpu_custom_call.1} parent=1 // pred_check_branch
      %33 = sbr.rel (0) target = $region13
    $region12: #{tpu_custom_call.1} parent=1 // pred_region
      %35 = vsyncadd [#allocation4], 0
      %s37 = sshll.u32 [#allocation5], 4
      %s38 = int_to_ptr.vmem [resolvable:$true] %s37
      %s39 = sshll.u32 %s1, 4
      %s40 = int_to_ptr.hbm [resolvable:$true] %s39
      %42 = dma.vmem_to_hbm [thread:$0]  %s38, 16, %s40, [#allocation4]
    $region13: #{tpu_custom_call.1} parent=1 // pred_fallthru
      _
    // Predicated region
    $region14: #{tpu_custom_call.1} parent=1 // pred_check
      _
    $region15: #{tpu_custom_call.1} parent=1 // pred_check_branch
      %44 = sbr.rel (0) target = $region17
    $region16: #{tpu_custom_call.1} parent=1 // pred_region
      %46 = dma.done [#allocation4], 16
    $region17: #{tpu_custom_call.1} parent=1 // pred_fallthru
      _
    %47 = vsyncpa [#allocation3], 1
    %48 = vsyncpa [#allocation4], 1

</llo_original>
